<compile_context>
chip_gen: v7x
topology: tpu7x:2x2x1
jax: 0.10.0
libtpu: 0.0.40
codegen_flags: <defaults>
</compile_context>

<pallas_src>
import jax
import jax.numpy as jnp
from jax.experimental import pallas as pl
from jax.experimental.pallas import tpu as pltpu


# ----------------------------- Pallas kernel --------------------------------

def fourier_filter_kernel(x_ref, k_ref, o_ref):
    """x_ref: (B, C*H*W) f32, k_ref: (C, H*W, H*W) bf16, o_ref: (B, C*H*W) f32."""
    C, HW, _ = k_ref.shape
    x = x_ref[...]                            # identity path stays f32
    xb = x.astype(jnp.bfloat16)               # MXU operand
    for c in range(C):                        # static unroll; C is small
        lo = c * HW                           # 128-aligned lane offset (HW = 256)
        corr = jnp.dot(xb[:, lo:lo + HW], k_ref[c],
                       preferred_element_type=jnp.float32)        # (B, HW) f32
        o_ref[:, lo:lo + HW] = x[:, lo:lo + HW] + corr


def _fourier_filter(x, k_blocks):
    """x: (B, C, H, W) f32 NCHW; k_blocks: (C, H*W, H*W) bf16 correction operator."""
    B, C, H, W = x.shape
    CHW = C * H * W
    x2 = x.reshape(B, CHW)                    # contiguous reshape: no data movement
    vmem = pl.BlockSpec(memory_space=pltpu.MemorySpace.VMEM)
    out2 = pl.pallas_call(
        fourier_filter_kernel,
        out_shape=jax.ShapeDtypeStruct((B, CHW), jnp.float32),
        in_specs=[vmem, vmem],                # whole arrays resident in VMEM
        out_specs=vmem,
    )(x2, k_blocks)
    return out2.reshape(B, C, H, W)           # contiguous reshape back to NCHW


fourier_filter = jax.jit(_fourier_filter)


# --------------------------- constant construction ---------------------------

def get_mask(h, w, kernel_size):
    # Faithful to the torch module:
    #   index_x = min(arange(0.1, h), arange(h, 0, -1)); index_y = arange(w)
    index_x = jnp.minimum(jnp.arange(h, dtype=jnp.float32) + 0.1,
                          jnp.arange(h, 0, -1).astype(jnp.float32))
    index_y = jnp.arange(w, dtype=jnp.float32)
    mask = jnp.maximum(index_x[:, None], index_y[None, :])
    return mask < (kernel_size / 2 + 0.1)


def build_filter(complex_weight, H, W, kernel_size):
    """torch masked_scatter of the (dim, k, k//2+1, 2) weight into the complex
    spectral filter G of shape (dim, H, W//2+1).  The '+1' is handled as an
    explicit identity path in the kernel, so it is NOT folded in here."""
    C, k, kc, _ = complex_weight.shape
    Wf = W // 2 + 1
    mask = get_mask(H, Wf, kernel_size)                   # (H, Wf) bool
    n_true = int(jnp.sum(mask))                           # concrete at setup time
    assert n_true == k * kc, (
        f"mask selects {n_true} entries but the weight provides {k * kc}; "
        "masked_scatter semantics would diverge for this geometry")
    rows, cols = jnp.nonzero(mask, size=n_true)           # row-major, like torch
    w = complex_weight.reshape(C, n_true, 2)
    G = (jnp.zeros((C, H, Wf), jnp.complex64)
         .at[:, rows, cols].set(w[..., 0] + 1j * w[..., 1]))
    return G


def build_correction_blocks(G, H, W):
    """Per-channel dense operator K_c such that
         flatten(irfft2(rfft2(v) * G_c, s=(H,W), norm='ortho'))  ==  flatten(v) @ K_c
    built by pushing the identity basis through the (ortho) real FFTs in f32."""
    HW = H * W
    eye = jnp.eye(HW, dtype=jnp.float32).reshape(HW, H, W)
    spec = jnp.fft.rfft2(eye, norm='ortho')               # (HW, H, W//2+1)

    def one_channel(Gc):
        out = jnp.fft.irfft2(spec * Gc[None], s=(H, W), norm='ortho')
        return out.reshape(HW, HW)                        # row j = op(e_j)  =>  v @ K

    return jax.vmap(one_channel)(G).astype(jnp.bfloat16)  # (C, HW, HW)


def reference(x, G):
    """Pure-JAX mirror of the torch forward (f32 FFTs)."""
    H, W = x.shape[-2:]
    Xf = jnp.fft.rfft2(x.astype(jnp.float32), norm='ortho')
    Xf = Xf * (1.0 + G)[None]
    return jnp.fft.irfft2(Xf, s=(H, W), norm='ortho').astype(jnp.float32)


# --------------------------------- main --------------------------------------

if __name__ == "__main__":
    B, C, H, W = 2, 4, 16, 16
    kernel_size = 7

    key = jax.random.PRNGKey(0)
    kx, kw = jax.random.split(key)
    x = jax.random.normal(kx, (B, C, H, W), jnp.float32)
    # nn.Parameter(torch.randn([dim, k, k//2+1, 2]) * 0.2), deterministic init
    complex_weight = jax.random.normal(
        kw, (C, kernel_size, kernel_size // 2 + 1, 2), jnp.float32) * 0.2

    G = build_filter(complex_weight, H, W, kernel_size)
    k_blocks = build_correction_blocks(G, H, W)

    out = jax.block_until_ready(fourier_filter(x, k_blocks))
    ref = jax.block_until_ready(reference(x, G))

    assert out.shape == (B, C, H, W) and out.dtype == jnp.float32
    max_err = float(jnp.max(jnp.abs(out - ref)))
    assert jnp.allclose(out, ref, atol=1e-2, rtol=1e-2), f"max abs err = {max_err}"

    print("KERNEL_OK")
</pallas_src>

<mosaic_0001>
module attributes {stable_mosaic.version = 11 : i64} {
  func.func @fourier_filter_kernel(%arg0: memref<2x1024xf32, #tpu.memory_space<vmem>>, %arg1: memref<4x256x256xbf16, #tpu.memory_space<vmem>>, %arg2: memref<2x1024xf32, #tpu.memory_space<vmem>>) attributes {dimension_semantics = [], scalar_prefetch = 0 : i64, scratch_operands = 0 : i64, tpu.core_type = #tpu.core_type<tc>} {
    %c0 = arith.constant 0 : index
    %c0_0 = arith.constant 0 : index
    %0 = vector.load %arg0[%c0, %c0_0] : memref<2x1024xf32, #tpu.memory_space<vmem>>, vector<2x1024xf32>
    %1 = arith.truncf %0 : vector<2x1024xf32> to vector<2x1024xbf16>
    %2 = vector.extract_strided_slice %1 {offsets = [0, 0], sizes = [2, 256], strides = [1, 1]} : vector<2x1024xbf16> to vector<2x256xbf16>
    %c0_1 = arith.constant 0 : index
    %c0_2 = arith.constant 0 : index
    %c0_3 = arith.constant 0 : index
    %3 = vector.load %arg1[%c0_1, %c0_2, %c0_3] : memref<4x256x256xbf16, #tpu.memory_space<vmem>>, vector<1x256x256xbf16>
    %4 = vector.shape_cast %3 : vector<1x256x256xbf16> to vector<256x256xbf16>
    %cst = arith.constant dense<0.000000e+00> : vector<2x256xf32>
    %5 = tpu.matmul %2, %4, %cst {dimension_numbers = #tpu.dot_dimension_numbers<[1], [0], [0], [1], [0, 0, 1, 1], [], []>} : vector<2x256xbf16>, vector<256x256xbf16>, vector<2x256xf32> -> vector<2x256xf32>
    %6 = vector.extract_strided_slice %0 {offsets = [0, 0], sizes = [2, 256], strides = [1, 1]} : vector<2x1024xf32> to vector<2x256xf32>
    %7 = arith.addf %6, %5 : vector<2x256xf32>
    %c0_4 = arith.constant 0 : index
    %c0_5 = arith.constant 0 : index
    %8 = vector.load %arg2[%c0_4, %c0_5] : memref<2x1024xf32, #tpu.memory_space<vmem>>, vector<2x256xf32>
    tpu.vector_store %arg2[%c0_4, %c0_5], %7 {strides = array<i32>} : memref<2x1024xf32, #tpu.memory_space<vmem>>, vector<2x256xf32>,
    %9 = vector.extract_strided_slice %1 {offsets = [0, 256], sizes = [2, 256], strides = [1, 1]} : vector<2x1024xbf16> to vector<2x256xbf16>
    %c1 = arith.constant 1 : index
    %c0_6 = arith.constant 0 : index
    %c0_7 = arith.constant 0 : index
    %10 = vector.load %arg1[%c1, %c0_6, %c0_7] : memref<4x256x256xbf16, #tpu.memory_space<vmem>>, vector<1x256x256xbf16>
    %11 = vector.shape_cast %10 : vector<1x256x256xbf16> to vector<256x256xbf16>
    %cst_8 = arith.constant dense<0.000000e+00> : vector<2x256xf32>
    %12 = tpu.matmul %9, %11, %cst_8 {dimension_numbers = #tpu.dot_dimension_numbers<[1], [0], [0], [1], [0, 0, 1, 1], [], []>} : vector<2x256xbf16>, vector<256x256xbf16>, vector<2x256xf32> -> vector<2x256xf32>
    %13 = vector.extract_strided_slice %0 {offsets = [0, 256], sizes = [2, 256], strides = [1, 1]} : vector<2x1024xf32> to vector<2x256xf32>
    %14 = arith.addf %13, %12 : vector<2x256xf32>
    %c0_9 = arith.constant 0 : index
    %c256 = arith.constant 256 : index
    %15 = vector.load %arg2[%c0_9, %c256] : memref<2x1024xf32, #tpu.memory_space<vmem>>, vector<2x256xf32>
    tpu.vector_store %arg2[%c0_9, %c256], %14 {strides = array<i32>} : memref<2x1024xf32, #tpu.memory_space<vmem>>, vector<2x256xf32>,
    %16 = vector.extract_strided_slice %1 {offsets = [0, 512], sizes = [2, 256], strides = [1, 1]} : vector<2x1024xbf16> to vector<2x256xbf16>
    %c2 = arith.constant 2 : index
    %c0_10 = arith.constant 0 : index
    %c0_11 = arith.constant 0 : index
    %17 = vector.load %arg1[%c2, %c0_10, %c0_11] : memref<4x256x256xbf16, #tpu.memory_space<vmem>>, vector<1x256x256xbf16>
    %18 = vector.shape_cast %17 : vector<1x256x256xbf16> to vector<256x256xbf16>
    %cst_12 = arith.constant dense<0.000000e+00> : vector<2x256xf32>
    %19 = tpu.matmul %16, %18, %cst_12 {dimension_numbers = #tpu.dot_dimension_numbers<[1], [0], [0], [1], [0, 0, 1, 1], [], []>} : vector<2x256xbf16>, vector<256x256xbf16>, vector<2x256xf32> -> vector<2x256xf32>
    %20 = vector.extract_strided_slice %0 {offsets = [0, 512], sizes = [2, 256], strides = [1, 1]} : vector<2x1024xf32> to vector<2x256xf32>
    %21 = arith.addf %20, %19 : vector<2x256xf32>
    %c0_13 = arith.constant 0 : index
    %c512 = arith.constant 512 : index
    %22 = vector.load %arg2[%c0_13, %c512] : memref<2x1024xf32, #tpu.memory_space<vmem>>, vector<2x256xf32>
    tpu.vector_store %arg2[%c0_13, %c512], %21 {strides = array<i32>} : memref<2x1024xf32, #tpu.memory_space<vmem>>, vector<2x256xf32>,
    %23 = vector.extract_strided_slice %1 {offsets = [0, 768], sizes = [2, 256], strides = [1, 1]} : vector<2x1024xbf16> to vector<2x256xbf16>
    %c3 = arith.constant 3 : index
    %c0_14 = arith.constant 0 : index
    %c0_15 = arith.constant 0 : index
    %24 = vector.load %arg1[%c3, %c0_14, %c0_15] : memref<4x256x256xbf16, #tpu.memory_space<vmem>>, vector<1x256x256xbf16>
    %25 = vector.shape_cast %24 : vector<1x256x256xbf16> to vector<256x256xbf16>
    %cst_16 = arith.constant dense<0.000000e+00> : vector<2x256xf32>
    %26 = tpu.matmul %23, %25, %cst_16 {dimension_numbers = #tpu.dot_dimension_numbers<[1], [0], [0], [1], [0, 0, 1, 1], [], []>} : vector<2x256xbf16>, vector<256x256xbf16>, vector<2x256xf32> -> vector<2x256xf32>
    %27 = vector.extract_strided_slice %0 {offsets = [0, 768], sizes = [2, 256], strides = [1, 1]} : vector<2x1024xf32> to vector<2x256xf32>
    %28 = arith.addf %27, %26 : vector<2x256xf32>
    %c0_17 = arith.constant 0 : index
    %c768 = arith.constant 768 : index
    %29 = vector.load %arg2[%c0_17, %c768] : memref<2x1024xf32, #tpu.memory_space<vmem>>, vector<2x256xf32>
    tpu.vector_store %arg2[%c0_17, %c768], %28 {strides = array<i32>} : memref<2x1024xf32, #tpu.memory_space<vmem>>, vector<2x256xf32>,
    return
  }
}

</mosaic_0001>

<llo_original>
// kernel: _fourier_filter.1
$region0: #{_fourier_filter.1}
  #allocation0 [shape = 'u32[]', space=smem, size = 0x4, offset = 0x4, fixed_abs, tag = 'smem constant byte address 0x4 - core index']
  #allocation1 [shape = 'u32[144,128]{1,0:T(1,128)}', space=vmem, size = 0x12000, scoped, tag = 'internal scratch']
  %s0 = inlined_call_operand.vmem [shape: f32[2,1024], index: 0, kind: input, shape index: {}]
  %s1 = inlined_call_operand.hbm [shape: bf16[4,256,256], index: 1, kind: input, shape index: {}]
  %s2 = inlined_call_operand.vmem [shape: f32[2,1024], index: 2, kind: output, shape index: {}]
  %s3 = sld [smem:[#allocation0]]
  $region22: #{_fourier_filter.1} parent=0
    _
  %s5 = ssub.s32 1, %s3
  %s6 = scalar_select 0, %s5, %s3
  $region1: #{_fourier_filter.1} parent=0
    #allocation2 [shape = 'u8[524288]{0}', space=vmem, size = 0x80000, scoped, tag = 'input window, operand 1, single buffered']
    #allocation3 [shape = 's32[1]{0}', space=sflag, size = 0x4, scoped, tag = 'scoped memory for _fourier_filter.1']
    %7 = vsyncpa [#allocation3], 0
    // Predicated region
    $region2: #{_fourier_filter.1} parent=1 // pred_check
      _
    $region3: #{_fourier_filter.1} parent=1 // pred_check_branch
      %9 = sbr.rel (0) target = $region5
    $region4: #{_fourier_filter.1} parent=1 // pred_region
      _
    $region5: #{_fourier_filter.1} parent=1 // pred_fallthru
      _
    // Predicated region
    $region6: #{_fourier_filter.1} parent=1 // pred_check
      _
    $region7: #{_fourier_filter.1} parent=1 // pred_check_branch
      %11 = sbr.rel (0) target = $region9
    $region8: #{_fourier_filter.1} parent=1 // pred_region
      %s13 = ssub.s32 16384, 16384
      %14 = vsyncadd [#allocation3], %s13
      %s15 = sshll.u32 [#allocation2], 4
      %s16 = int_to_ptr.vmem [resolvable:$true] %s15
      %21 = dma.hbm_to_vmem [thread:$0]  %s1, 16384, %s16, [#allocation3], 128, 128, 8
    $region9: #{_fourier_filter.1} parent=1 // pred_fallthru
      _
    // Predicated region
    $region10: #{_fourier_filter.1} parent=1 // pred_check
      _
    $region11: #{_fourier_filter.1} parent=1 // pred_check_branch
      %23 = sbr.rel (0) target = $region13
    $region12: #{_fourier_filter.1} parent=1 // pred_region
      %24 = dma.done [#allocation3], 16384
    $region13: #{_fourier_filter.1} parent=1 // pred_fallthru
      _
    %v25 = vld [vmem:[%s0] sm:$0xff]
    %v26 = vld [vmem:[%s0 + $0x8] sm:$0xff]
    %v29 = vcombine.high %v25, %v25
    %v31 = vunpack.c.l.s4 1983009808
    %v32 = vunpack.c.0.s8 %v31
    %v33 = vlaneseq
    %v34 = vshrl.u32 %v33, 7
    %v35 = vsub.s32 %v32, %v34
    %v36 = vrot.slane %v25, %v35
    %v38 = vunpack.c.l.s4 1983009808
    %v39 = vunpack.c.0.s8 %v38
    %v40 = vlaneseq
    %v41 = vshrl.u32 %v40, 7
    %v42 = vsub.s32 %v39, %v41
    %v43 = vrot.slane %v29, %v42
    %v44 = vcombine.high %v36, %v36
    %v45 = vcombine.high %v43, %v43
    %v46 = vcombine.high %v26, %v26
    %v48 = vunpack.c.l.s4 1983009808
    %v49 = vunpack.c.0.s8 %v48
    %v50 = vlaneseq
    %v51 = vshrl.u32 %v50, 7
    %v52 = vsub.s32 %v49, %v51
    %v53 = vrot.slane %v26, %v52
    %v55 = vunpack.c.l.s4 1983009808
    %v56 = vunpack.c.0.s8 %v55
    %v57 = vlaneseq
    %v58 = vshrl.u32 %v57, 7
    %v59 = vsub.s32 %v56, %v58
    %v60 = vrot.slane %v46, %v59
    %v61 = vcombine.high %v53, %v53
    %v62 = vcombine.high %v60, %v60
    %v71 = vpack.c.bf16 %v36, %v36
    %v72 = vpack.c.bf16 %v44, %v44
    %v73 = vpack.c.bf16 %v43, %v43
    %v74 = vpack.c.bf16 %v45, %v45
    %v75 = vpack.c.bf16 %v53, %v53
    %v76 = vpack.c.bf16 %v61, %v61
    %v77 = vpack.c.bf16 %v60, %v60
    %v78 = vpack.c.bf16 %v62, %v62
    %v79 = vld [vmem:[#allocation2] sm:$0xff]
    %v80 = vld [vmem:[#allocation2 + $0x8] sm:$0xff]
    %v81 = vld [vmem:[#allocation2 + $0x10] sm:$0xff]
    %v82 = vld [vmem:[#allocation2 + $0x18] sm:$0xff]
    %v83 = vld [vmem:[#allocation2 + $0x20] sm:$0xff]
    %v84 = vld [vmem:[#allocation2 + $0x28] sm:$0xff]
    %v85 = vld [vmem:[#allocation2 + $0x30] sm:$0xff]
    %v86 = vld [vmem:[#allocation2 + $0x38] sm:$0xff]
    %v87 = vld [vmem:[#allocation2 + $0x40] sm:$0xff]
    %v88 = vld [vmem:[#allocation2 + $0x48] sm:$0xff]
    %v89 = vld [vmem:[#allocation2 + $0x50] sm:$0xff]
    %v90 = vld [vmem:[#allocation2 + $0x58] sm:$0xff]
    %v91 = vld [vmem:[#allocation2 + $0x60] sm:$0xff]
    %v92 = vld [vmem:[#allocation2 + $0x68] sm:$0xff]
    %v93 = vld [vmem:[#allocation2 + $0x70] sm:$0xff]
    %v94 = vld [vmem:[#allocation2 + $0x78] sm:$0xff]
    %v95 = vld [vmem:[#allocation2 + $0x80] sm:$0xff]
    %v96 = vld [vmem:[#allocation2 + $0x88] sm:$0xff]
    %v97 = vld [vmem:[#allocation2 + $0x90] sm:$0xff]
    %v98 = vld [vmem:[#allocation2 + $0x98] sm:$0xff]
    %v99 = vld [vmem:[#allocation2 + $0xa0] sm:$0xff]
    %v100 = vld [vmem:[#allocation2 + $0xa8] sm:$0xff]
    %v101 = vld [vmem:[#allocation2 + $0xb0] sm:$0xff]
    %v102 = vld [vmem:[#allocation2 + $0xb8] sm:$0xff]
    %v103 = vld [vmem:[#allocation2 + $0xc0] sm:$0xff]
    %v104 = vld [vmem:[#allocation2 + $0xc8] sm:$0xff]
    %v105 = vld [vmem:[#allocation2 + $0xd0] sm:$0xff]
    %v106 = vld [vmem:[#allocation2 + $0xd8] sm:$0xff]
    %v107 = vld [vmem:[#allocation2 + $0xe0] sm:$0xff]
    %v108 = vld [vmem:[#allocation2 + $0xe8] sm:$0xff]
    %v109 = vld [vmem:[#allocation2 + $0xf0] sm:$0xff]
    %v110 = vld [vmem:[#allocation2 + $0xf8] sm:$0xff]
    %v143 = vunpack.c.l.b16 %v79
    %v144 = vunpack.c.h.b16 %v79
    %v145 = vunpack.c.l.b16 %v80
    %v146 = vunpack.c.h.b16 %v80
    %v147 = vunpack.c.l.b16 %v81
    %v148 = vunpack.c.h.b16 %v81
    %v149 = vunpack.c.l.b16 %v82
    %v150 = vunpack.c.h.b16 %v82
    %v151 = vunpack.c.l.b16 %v83
    %v152 = vunpack.c.h.b16 %v83
    %v153 = vunpack.c.l.b16 %v84
    %v154 = vunpack.c.h.b16 %v84
    %v155 = vunpack.c.l.b16 %v85
    %v156 = vunpack.c.h.b16 %v85
    %v157 = vunpack.c.l.b16 %v86
    %v158 = vunpack.c.h.b16 %v86
    %v159 = vunpack.c.l.b16 %v87
    %v160 = vunpack.c.h.b16 %v87
    %v161 = vunpack.c.l.b16 %v88
    %v162 = vunpack.c.h.b16 %v88
    %v163 = vunpack.c.l.b16 %v89
    %v164 = vunpack.c.h.b16 %v89
    %v165 = vunpack.c.l.b16 %v90
    %v166 = vunpack.c.h.b16 %v90
    %v167 = vunpack.c.l.b16 %v91
    %v168 = vunpack.c.h.b16 %v91
    %v169 = vunpack.c.l.b16 %v92
    %v170 = vunpack.c.h.b16 %v92
    %v171 = vunpack.c.l.b16 %v93
    %v172 = vunpack.c.h.b16 %v93
    %v173 = vunpack.c.l.b16 %v94
    %v174 = vunpack.c.h.b16 %v94
    %v175 = vunpack.c.l.b16 %v95
    %v176 = vunpack.c.h.b16 %v95
    %v177 = vunpack.c.l.b16 %v96
    %v178 = vunpack.c.h.b16 %v96
    %v179 = vunpack.c.l.b16 %v97
    %v180 = vunpack.c.h.b16 %v97
    %v181 = vunpack.c.l.b16 %v98
    %v182 = vunpack.c.h.b16 %v98
    %v183 = vunpack.c.l.b16 %v99
    %v184 = vunpack.c.h.b16 %v99
    %v185 = vunpack.c.l.b16 %v100
    %v186 = vunpack.c.h.b16 %v100
    %v187 = vunpack.c.l.b16 %v101
    %v188 = vunpack.c.h.b16 %v101
    %v189 = vunpack.c.l.b16 %v102
    %v190 = vunpack.c.h.b16 %v102
    %v191 = vunpack.c.l.b16 %v103
    %v192 = vunpack.c.h.b16 %v103
    %v193 = vunpack.c.l.b16 %v104
    %v194 = vunpack.c.h.b16 %v104
    %v195 = vunpack.c.l.b16 %v105
    %v196 = vunpack.c.h.b16 %v105
    %v197 = vunpack.c.l.b16 %v106
    %v198 = vunpack.c.h.b16 %v106
    %v199 = vunpack.c.l.b16 %v107
    %v200 = vunpack.c.h.b16 %v107
    %v201 = vunpack.c.l.b16 %v108
    %v202 = vunpack.c.h.b16 %v108
    %v203 = vunpack.c.l.b16 %v109
    %v204 = vunpack.c.h.b16 %v109
    %v205 = vunpack.c.l.b16 %v110
    %v206 = vunpack.c.h.b16 %v110
    %v207 = vpack.c.b16 %v145, %v143
    %v208 = vpack.c.b16 %v146, %v144
    %v209 = vpack.c.b16 %v149, %v147
    %v210 = vpack.c.b16 %v150, %v148
    %v211 = vpack.c.b16 %v153, %v151
    %v212 = vpack.c.b16 %v154, %v152
    %v213 = vpack.c.b16 %v157, %v155
    %v214 = vpack.c.b16 %v158, %v156
    %v215 = vpack.c.b16 %v161, %v159
    %v216 = vpack.c.b16 %v162, %v160
    %v217 = vpack.c.b16 %v165, %v163
    %v218 = vpack.c.b16 %v166, %v164
    %v219 = vpack.c.b16 %v169, %v167
    %v220 = vpack.c.b16 %v170, %v168
    %v221 = vpack.c.b16 %v173, %v171
    %v222 = vpack.c.b16 %v174, %v172
    %v223 = vpack.c.b16 %v177, %v175
    %v224 = vpack.c.b16 %v178, %v176
    %v225 = vpack.c.b16 %v181, %v179
    %v226 = vpack.c.b16 %v182, %v180
    %v227 = vpack.c.b16 %v185, %v183
    %v228 = vpack.c.b16 %v186, %v184
    %v229 = vpack.c.b16 %v189, %v187
    %v230 = vpack.c.b16 %v190, %v188
    %v231 = vpack.c.b16 %v193, %v191
    %v232 = vpack.c.b16 %v194, %v192
    %v233 = vpack.c.b16 %v197, %v195
    %v234 = vpack.c.b16 %v198, %v196
    %v235 = vpack.c.b16 %v201, %v199
    %v236 = vpack.c.b16 %v202, %v200
    %v237 = vpack.c.b16 %v205, %v203
    %v238 = vpack.c.b16 %v206, %v204
    %271 = vmatprep.subr.bf16.mxu0 %v208
    %272 = vmatpush1.bf16.msra.mxu0 %v207
    %273 = vmatprep.subr.bf16.mxu0 %v210
    %274 = vmatpush1.bf16.msra.mxu0 %v209
    %275 = vmatprep.subr.bf16.mxu0 %v212
    %276 = vmatpush1.bf16.msra.mxu0 %v211
    %277 = vmatprep.subr.bf16.mxu0 %v214
    %278 = vmatpush1.bf16.msra.mxu0 %v213
    %279 = vmatprep.subr.bf16.mxu0 %v216
    %280 = vmatpush1.bf16.msra.mxu0 %v215
    %281 = vmatprep.subr.bf16.mxu0 %v218
    %282 = vmatpush1.bf16.msra.mxu0 %v217
    %283 = vmatprep.subr.bf16.mxu0 %v220
    %284 = vmatpush1.bf16.msra.mxu0 %v219
    %285 = vmatprep.subr.bf16.mxu0 %v222
    %286 = vmatpush1.bf16.msra.mxu0 %v221
    %287 = vmatprep.subr.bf16.mxu0 %v224
    %288 = vmatpush1.bf16.msra.mxu0 %v223
    %289 = vmatprep.subr.bf16.mxu0 %v226
    %290 = vmatpush1.bf16.msra.mxu0 %v225
    %291 = vmatprep.subr.bf16.mxu0 %v228
    %292 = vmatpush1.bf16.msra.mxu0 %v227
    %293 = vmatprep.subr.bf16.mxu0 %v230
    %294 = vmatpush1.bf16.msra.mxu0 %v229
    %295 = vmatprep.subr.bf16.mxu0 %v232
    %296 = vmatpush1.bf16.msra.mxu0 %v231
    %297 = vmatprep.subr.bf16.mxu0 %v234
    %298 = vmatpush1.bf16.msra.mxu0 %v233
    %299 = vmatprep.subr.bf16.mxu0 %v236
    %300 = vmatpush1.bf16.msra.mxu0 %v235
    %301 = vmatprep.subr.bf16.mxu0 %v238
    %302 = vmatpush1.bf16.msra.mxu0 %v237
    %303 = vmatprep.mubr.bf16.mxu0 %v72
    %304 = vmatmul.mubr.bf16.gmra.mrb[0].mxu0 %v71
    %v305 = vpop.f32.mrb[0].mxu0
    %v306 = vadd.f32 0.0, %v305
    %v307 = vpop.f32.mrb[0].mxu0
    %v308 = vadd.f32 0.0, %v307
    %v309 = vpop.f32.mrb[0].mxu0
    %v310 = vpop.f32.mrb[0].mxu0
    %311 = vdwg.mxu0
    %v314 = vcombine.low %v306, %v308
    %v316 = vunpack.c.l.s4 1983009808
    %v317 = vunpack.c.0.s8 %v316
    %v318 = vlaneseq
    %v319 = vshrl.u32 %v318, 7
    %v320 = vsub.s32 %v317, %v319
    %v321 = vrot.slane %v314, %v320
    %v323 = vadd.f32 %v25, %v321
    %324 = vst [vmem:[%s2] sm:$0xf] %v323
    %s325 = scalar_lea.vmem [#allocation2], 256
    %v326 = vld [vmem:[%s325] sm:$0xff]
    %v327 = vld [vmem:[%s325 + $0x8] sm:$0xff]
    %v328 = vld [vmem:[%s325 + $0x10] sm:$0xff]
    %v329 = vld [vmem:[%s325 + $0x18] sm:$0xff]
    %v330 = vld [vmem:[%s325 + $0x20] sm:$0xff]
    %v331 = vld [vmem:[%s325 + $0x28] sm:$0xff]
    %v332 = vld [vmem:[%s325 + $0x30] sm:$0xff]
    %v333 = vld [vmem:[%s325 + $0x38] sm:$0xff]
    %v334 = vld [vmem:[%s325 + $0x40] sm:$0xff]
    %v335 = vld [vmem:[%s325 + $0x48] sm:$0xff]
    %v336 = vld [vmem:[%s325 + $0x50] sm:$0xff]
    %v337 = vld [vmem:[%s325 + $0x58] sm:$0xff]
    %v338 = vld [vmem:[%s325 + $0x60] sm:$0xff]
    %v339 = vld [vmem:[%s325 + $0x68] sm:$0xff]
    %v340 = vld [vmem:[%s325 + $0x70] sm:$0xff]
    %v341 = vld [vmem:[%s325 + $0x78] sm:$0xff]
    %v342 = vld [vmem:[%s325 + $0x80] sm:$0xff]
    %v343 = vld [vmem:[%s325 + $0x88] sm:$0xff]
    %v344 = vld [vmem:[%s325 + $0x90] sm:$0xff]
    %v345 = vld [vmem:[%s325 + $0x98] sm:$0xff]
    %v346 = vld [vmem:[%s325 + $0xa0] sm:$0xff]
    %v347 = vld [vmem:[%s325 + $0xa8] sm:$0xff]
    %v348 = vld [vmem:[%s325 + $0xb0] sm:$0xff]
    %v349 = vld [vmem:[%s325 + $0xb8] sm:$0xff]
    %v350 = vld [vmem:[%s325 + $0xc0] sm:$0xff]
    %v351 = vld [vmem:[%s325 + $0xc8] sm:$0xff]
    %v352 = vld [vmem:[%s325 + $0xd0] sm:$0xff]
    %v353 = vld [vmem:[%s325 + $0xd8] sm:$0xff]
    %v354 = vld [vmem:[%s325 + $0xe0] sm:$0xff]
    %v355 = vld [vmem:[%s325 + $0xe8] sm:$0xff]
    %v356 = vld [vmem:[%s325 + $0xf0] sm:$0xff]
    %v357 = vld [vmem:[%s325 + $0xf8] sm:$0xff]
    %v390 = vunpack.c.l.b16 %v326
    %v391 = vunpack.c.h.b16 %v326
    %v392 = vunpack.c.l.b16 %v327
    %v393 = vunpack.c.h.b16 %v327
    %v394 = vunpack.c.l.b16 %v328
    %v395 = vunpack.c.h.b16 %v328
    %v396 = vunpack.c.l.b16 %v329
    %v397 = vunpack.c.h.b16 %v329
    %v398 = vunpack.c.l.b16 %v330
    %v399 = vunpack.c.h.b16 %v330
    %v400 = vunpack.c.l.b16 %v331
    %v401 = vunpack.c.h.b16 %v331
    %v402 = vunpack.c.l.b16 %v332
    %v403 = vunpack.c.h.b16 %v332
    %v404 = vunpack.c.l.b16 %v333
    %v405 = vunpack.c.h.b16 %v333
    %v406 = vunpack.c.l.b16 %v334
    %v407 = vunpack.c.h.b16 %v334
    %v408 = vunpack.c.l.b16 %v335
    %v409 = vunpack.c.h.b16 %v335
    %v410 = vunpack.c.l.b16 %v336
    %v411 = vunpack.c.h.b16 %v336
    %v412 = vunpack.c.l.b16 %v337
    %v413 = vunpack.c.h.b16 %v337
    %v414 = vunpack.c.l.b16 %v338
    %v415 = vunpack.c.h.b16 %v338
    %v416 = vunpack.c.l.b16 %v339
    %v417 = vunpack.c.h.b16 %v339
    %v418 = vunpack.c.l.b16 %v340
    %v419 = vunpack.c.h.b16 %v340
    %v420 = vunpack.c.l.b16 %v341
    %v421 = vunpack.c.h.b16 %v341
    %v422 = vunpack.c.l.b16 %v342
    %v423 = vunpack.c.h.b16 %v342
    %v424 = vunpack.c.l.b16 %v343
    %v425 = vunpack.c.h.b16 %v343
    %v426 = vunpack.c.l.b16 %v344
    %v427 = vunpack.c.h.b16 %v344
    %v428 = vunpack.c.l.b16 %v345
    %v429 = vunpack.c.h.b16 %v345
    %v430 = vunpack.c.l.b16 %v346
    %v431 = vunpack.c.h.b16 %v346
    %v432 = vunpack.c.l.b16 %v347
    %v433 = vunpack.c.h.b16 %v347
    %v434 = vunpack.c.l.b16 %v348
    %v435 = vunpack.c.h.b16 %v348
    %v436 = vunpack.c.l.b16 %v349
    %v437 = vunpack.c.h.b16 %v349
    %v438 = vunpack.c.l.b16 %v350
    %v439 = vunpack.c.h.b16 %v350
    %v440 = vunpack.c.l.b16 %v351
    %v441 = vunpack.c.h.b16 %v351
    %v442 = vunpack.c.l.b16 %v352
    %v443 = vunpack.c.h.b16 %v352
    %v444 = vunpack.c.l.b16 %v353
    %v445 = vunpack.c.h.b16 %v353
    %v446 = vunpack.c.l.b16 %v354
    %v447 = vunpack.c.h.b16 %v354
    %v448 = vunpack.c.l.b16 %v355
    %v449 = vunpack.c.h.b16 %v355
    %v450 = vunpack.c.l.b16 %v356
    %v451 = vunpack.c.h.b16 %v356
    %v452 = vunpack.c.l.b16 %v357
    %v453 = vunpack.c.h.b16 %v357
    %v454 = vpack.c.b16 %v392, %v390
    %v455 = vpack.c.b16 %v393, %v391
    %v456 = vpack.c.b16 %v396, %v394
    %v457 = vpack.c.b16 %v397, %v395
    %v458 = vpack.c.b16 %v400, %v398
    %v459 = vpack.c.b16 %v401, %v399
    %v460 = vpack.c.b16 %v404, %v402
    %v461 = vpack.c.b16 %v405, %v403
    %v462 = vpack.c.b16 %v408, %v406
    %v463 = vpack.c.b16 %v409, %v407
    %v464 = vpack.c.b16 %v412, %v410
    %v465 = vpack.c.b16 %v413, %v411
    %v466 = vpack.c.b16 %v416, %v414
    %v467 = vpack.c.b16 %v417, %v415
    %v468 = vpack.c.b16 %v420, %v418
    %v469 = vpack.c.b16 %v421, %v419
    %v470 = vpack.c.b16 %v424, %v422
    %v471 = vpack.c.b16 %v425, %v423
    %v472 = vpack.c.b16 %v428, %v426
    %v473 = vpack.c.b16 %v429, %v427
    %v474 = vpack.c.b16 %v432, %v430
    %v475 = vpack.c.b16 %v433, %v431
    %v476 = vpack.c.b16 %v436, %v434
    %v477 = vpack.c.b16 %v437, %v435
    %v478 = vpack.c.b16 %v440, %v438
    %v479 = vpack.c.b16 %v441, %v439
    %v480 = vpack.c.b16 %v444, %v442
    %v481 = vpack.c.b16 %v445, %v443
    %v482 = vpack.c.b16 %v448, %v446
    %v483 = vpack.c.b16 %v449, %v447
    %v484 = vpack.c.b16 %v452, %v450
    %v485 = vpack.c.b16 %v453, %v451
    %518 = vmatprep.subr.bf16.mxu0 %v455
    %519 = vmatpush1.bf16.msra.mxu0 %v454
    %520 = vmatprep.subr.bf16.mxu0 %v457
    %521 = vmatpush1.bf16.msra.mxu0 %v456
    %522 = vmatprep.subr.bf16.mxu0 %v459
    %523 = vmatpush1.bf16.msra.mxu0 %v458
    %524 = vmatprep.subr.bf16.mxu0 %v461
    %525 = vmatpush1.bf16.msra.mxu0 %v460
    %526 = vmatprep.subr.bf16.mxu0 %v463
    %527 = vmatpush1.bf16.msra.mxu0 %v462
    %528 = vmatprep.subr.bf16.mxu0 %v465
    %529 = vmatpush1.bf16.msra.mxu0 %v464
    %530 = vmatprep.subr.bf16.mxu0 %v467
    %531 = vmatpush1.bf16.msra.mxu0 %v466
    %532 = vmatprep.subr.bf16.mxu0 %v469
    %533 = vmatpush1.bf16.msra.mxu0 %v468
    %534 = vmatprep.subr.bf16.mxu0 %v471
    %535 = vmatpush1.bf16.msra.mxu0 %v470
    %536 = vmatprep.subr.bf16.mxu0 %v473
    %537 = vmatpush1.bf16.msra.mxu0 %v472
    %538 = vmatprep.subr.bf16.mxu0 %v475
    %539 = vmatpush1.bf16.msra.mxu0 %v474
    %540 = vmatprep.subr.bf16.mxu0 %v477
    %541 = vmatpush1.bf16.msra.mxu0 %v476
    %542 = vmatprep.subr.bf16.mxu0 %v479
    %543 = vmatpush1.bf16.msra.mxu0 %v478
    %544 = vmatprep.subr.bf16.mxu0 %v481
    %545 = vmatpush1.bf16.msra.mxu0 %v480
    %546 = vmatprep.subr.bf16.mxu0 %v483
    %547 = vmatpush1.bf16.msra.mxu0 %v482
    %548 = vmatprep.subr.bf16.mxu0 %v485
    %549 = vmatpush1.bf16.msra.mxu0 %v484
    %550 = vmatprep.mubr.bf16.mxu0 %v74
    %551 = vmatmul.mubr.bf16.gmra.mrb[0].mxu0 %v73
    %v552 = vpop.f32.mrb[0].mxu0
    %v553 = vadd.f32 0.0, %v552
    %v554 = vpop.f32.mrb[0].mxu0
    %v555 = vadd.f32 0.0, %v554
    %v556 = vpop.f32.mrb[0].mxu0
    %v557 = vpop.f32.mrb[0].mxu0
    %558 = vdwg.mxu0
    %v559 = vrot.slane %v25, 4
    %v563 = vcombine.low %v553, %v555
    %v565 = vunpack.c.l.s4 1983009808
    %v566 = vunpack.c.0.s8 %v565
    %v567 = vlaneseq
    %v568 = vshrl.u32 %v567, 7
    %v569 = vsub.s32 %v566, %v568
    %v570 = vrot.slane %v563, %v569
    %v572 = vadd.f32 %v559, %v570
    %573 = vst [vmem:[%s2 + $0x4] sm:$0xf] %v572
    %s574 = scalar_lea.vmem [#allocation2], 512
    %v575 = vld [vmem:[%s574] sm:$0xff]
    %v576 = vld [vmem:[%s574 + $0x8] sm:$0xff]
    %v577 = vld [vmem:[%s574 + $0x10] sm:$0xff]
    %v578 = vld [vmem:[%s574 + $0x18] sm:$0xff]
    %v579 = vld [vmem:[%s574 + $0x20] sm:$0xff]
    %v580 = vld [vmem:[%s574 + $0x28] sm:$0xff]
    %v581 = vld [vmem:[%s574 + $0x30] sm:$0xff]
    %v582 = vld [vmem:[%s574 + $0x38] sm:$0xff]
    %v583 = vld [vmem:[%s574 + $0x40] sm:$0xff]
    %v584 = vld [vmem:[%s574 + $0x48] sm:$0xff]
    %v585 = vld [vmem:[%s574 + $0x50] sm:$0xff]
    %v586 = vld [vmem:[%s574 + $0x58] sm:$0xff]
    %v587 = vld [vmem:[%s574 + $0x60] sm:$0xff]
    %v588 = vld [vmem:[%s574 + $0x68] sm:$0xff]
    %v589 = vld [vmem:[%s574 + $0x70] sm:$0xff]
    %v590 = vld [vmem:[%s574 + $0x78] sm:$0xff]
    %v591 = vld [vmem:[%s574 + $0x80] sm:$0xff]
    %v592 = vld [vmem:[%s574 + $0x88] sm:$0xff]
    %v593 = vld [vmem:[%s574 + $0x90] sm:$0xff]
    %v594 = vld [vmem:[%s574 + $0x98] sm:$0xff]
    %v595 = vld [vmem:[%s574 + $0xa0] sm:$0xff]
    %v596 = vld [vmem:[%s574 + $0xa8] sm:$0xff]
    %v597 = vld [vmem:[%s574 + $0xb0] sm:$0xff]
    %v598 = vld [vmem:[%s574 + $0xb8] sm:$0xff]
    %v599 = vld [vmem:[%s574 + $0xc0] sm:$0xff]
    %v600 = vld [vmem:[%s574 + $0xc8] sm:$0xff]
    %v601 = vld [vmem:[%s574 + $0xd0] sm:$0xff]
    %v602 = vld [vmem:[%s574 + $0xd8] sm:$0xff]
    %v603 = vld [vmem:[%s574 + $0xe0] sm:$0xff]
    %v604 = vld [vmem:[%s574 + $0xe8] sm:$0xff]
    %v605 = vld [vmem:[%s574 + $0xf0] sm:$0xff]
    %v606 = vld [vmem:[%s574 + $0xf8] sm:$0xff]
    %v639 = vunpack.c.l.b16 %v575
    %v640 = vunpack.c.h.b16 %v575
    %v641 = vunpack.c.l.b16 %v576
    %v642 = vunpack.c.h.b16 %v576
    %v643 = vunpack.c.l.b16 %v577
    %v644 = vunpack.c.h.b16 %v577
    %v645 = vunpack.c.l.b16 %v578
    %v646 = vunpack.c.h.b16 %v578
    %v647 = vunpack.c.l.b16 %v579
    %v648 = vunpack.c.h.b16 %v579
    %v649 = vunpack.c.l.b16 %v580
    %v650 = vunpack.c.h.b16 %v580
    %v651 = vunpack.c.l.b16 %v581
    %v652 = vunpack.c.h.b16 %v581
    %v653 = vunpack.c.l.b16 %v582
    %v654 = vunpack.c.h.b16 %v582
    %v655 = vunpack.c.l.b16 %v583
    %v656 = vunpack.c.h.b16 %v583
    %v657 = vunpack.c.l.b16 %v584
    %v658 = vunpack.c.h.b16 %v584
    %v659 = vunpack.c.l.b16 %v585
    %v660 = vunpack.c.h.b16 %v585
    %v661 = vunpack.c.l.b16 %v586
    %v662 = vunpack.c.h.b16 %v586
    %v663 = vunpack.c.l.b16 %v587
    %v664 = vunpack.c.h.b16 %v587
    %v665 = vunpack.c.l.b16 %v588
    %v666 = vunpack.c.h.b16 %v588
    %v667 = vunpack.c.l.b16 %v589
    %v668 = vunpack.c.h.b16 %v589
    %v669 = vunpack.c.l.b16 %v590
    %v670 = vunpack.c.h.b16 %v590
    %v671 = vunpack.c.l.b16 %v591
    %v672 = vunpack.c.h.b16 %v591
    %v673 = vunpack.c.l.b16 %v592
    %v674 = vunpack.c.h.b16 %v592
    %v675 = vunpack.c.l.b16 %v593
    %v676 = vunpack.c.h.b16 %v593
    %v677 = vunpack.c.l.b16 %v594
    %v678 = vunpack.c.h.b16 %v594
    %v679 = vunpack.c.l.b16 %v595
    %v680 = vunpack.c.h.b16 %v595
    %v681 = vunpack.c.l.b16 %v596
    %v682 = vunpack.c.h.b16 %v596
    %v683 = vunpack.c.l.b16 %v597
    %v684 = vunpack.c.h.b16 %v597
    %v685 = vunpack.c.l.b16 %v598
    %v686 = vunpack.c.h.b16 %v598
    %v687 = vunpack.c.l.b16 %v599
    %v688 = vunpack.c.h.b16 %v599
    %v689 = vunpack.c.l.b16 %v600
    %v690 = vunpack.c.h.b16 %v600
    %v691 = vunpack.c.l.b16 %v601
    %v692 = vunpack.c.h.b16 %v601
    %v693 = vunpack.c.l.b16 %v602
    %v694 = vunpack.c.h.b16 %v602
    %v695 = vunpack.c.l.b16 %v603
    %v696 = vunpack.c.h.b16 %v603
    %v697 = vunpack.c.l.b16 %v604
    %v698 = vunpack.c.h.b16 %v604
    %v699 = vunpack.c.l.b16 %v605
    %v700 = vunpack.c.h.b16 %v605
    %v701 = vunpack.c.l.b16 %v606
    %v702 = vunpack.c.h.b16 %v606
    %v703 = vpack.c.b16 %v641, %v639
    %v704 = vpack.c.b16 %v642, %v640
    %v705 = vpack.c.b16 %v645, %v643
    %v706 = vpack.c.b16 %v646, %v644
    %v707 = vpack.c.b16 %v649, %v647
    %v708 = vpack.c.b16 %v650, %v648
    %v709 = vpack.c.b16 %v653, %v651
    %v710 = vpack.c.b16 %v654, %v652
    %v711 = vpack.c.b16 %v657, %v655
    %v712 = vpack.c.b16 %v658, %v656
    %v713 = vpack.c.b16 %v661, %v659
    %v714 = vpack.c.b16 %v662, %v660
    %v715 = vpack.c.b16 %v665, %v663
    %v716 = vpack.c.b16 %v666, %v664
    %v717 = vpack.c.b16 %v669, %v667
    %v718 = vpack.c.b16 %v670, %v668
    %v719 = vpack.c.b16 %v673, %v671
    %v720 = vpack.c.b16 %v674, %v672
    %v721 = vpack.c.b16 %v677, %v675
    %v722 = vpack.c.b16 %v678, %v676
    %v723 = vpack.c.b16 %v681, %v679
    %v724 = vpack.c.b16 %v682, %v680
    %v725 = vpack.c.b16 %v685, %v683
    %v726 = vpack.c.b16 %v686, %v684
    %v727 = vpack.c.b16 %v689, %v687
    %v728 = vpack.c.b16 %v690, %v688
    %v729 = vpack.c.b16 %v693, %v691
    %v730 = vpack.c.b16 %v694, %v692
    %v731 = vpack.c.b16 %v697, %v695
    %v732 = vpack.c.b16 %v698, %v696
    %v733 = vpack.c.b16 %v701, %v699
    %v734 = vpack.c.b16 %v702, %v700
    %767 = vmatprep.subr.bf16.mxu0 %v704
    %768 = vmatpush1.bf16.msra.mxu0 %v703
    %769 = vmatprep.subr.bf16.mxu0 %v706
    %770 = vmatpush1.bf16.msra.mxu0 %v705
    %771 = vmatprep.subr.bf16.mxu0 %v708
    %772 = vmatpush1.bf16.msra.mxu0 %v707
    %773 = vmatprep.subr.bf16.mxu0 %v710
    %774 = vmatpush1.bf16.msra.mxu0 %v709
    %775 = vmatprep.subr.bf16.mxu0 %v712
    %776 = vmatpush1.bf16.msra.mxu0 %v711
    %777 = vmatprep.subr.bf16.mxu0 %v714
    %778 = vmatpush1.bf16.msra.mxu0 %v713
    %779 = vmatprep.subr.bf16.mxu0 %v716
    %780 = vmatpush1.bf16.msra.mxu0 %v715
    %781 = vmatprep.subr.bf16.mxu0 %v718
    %782 = vmatpush1.bf16.msra.mxu0 %v717
    %783 = vmatprep.subr.bf16.mxu0 %v720
    %784 = vmatpush1.bf16.msra.mxu0 %v719
    %785 = vmatprep.subr.bf16.mxu0 %v722
    %786 = vmatpush1.bf16.msra.mxu0 %v721
    %787 = vmatprep.subr.bf16.mxu0 %v724
    %788 = vmatpush1.bf16.msra.mxu0 %v723
    %789 = vmatprep.subr.bf16.mxu0 %v726
    %790 = vmatpush1.bf16.msra.mxu0 %v725
    %791 = vmatprep.subr.bf16.mxu0 %v728
    %792 = vmatpush1.bf16.msra.mxu0 %v727
    %793 = vmatprep.subr.bf16.mxu0 %v730
    %794 = vmatpush1.bf16.msra.mxu0 %v729
    %795 = vmatprep.subr.bf16.mxu0 %v732
    %796 = vmatpush1.bf16.msra.mxu0 %v731
    %797 = vmatprep.subr.bf16.mxu0 %v734
    %798 = vmatpush1.bf16.msra.mxu0 %v733
    %799 = vmatprep.mubr.bf16.mxu0 %v76
    %800 = vmatmul.mubr.bf16.gmra.mrb[0].mxu0 %v75
    %v801 = vpop.f32.mrb[0].mxu0
    %v802 = vadd.f32 0.0, %v801
    %v803 = vpop.f32.mrb[0].mxu0
    %v804 = vadd.f32 0.0, %v803
    %v805 = vpop.f32.mrb[0].mxu0
    %v806 = vpop.f32.mrb[0].mxu0
    %807 = vdwg.mxu0
    %v810 = vcombine.low %v802, %v804
    %v812 = vunpack.c.l.s4 1983009808
    %v813 = vunpack.c.0.s8 %v812
    %v814 = vlaneseq
    %v815 = vshrl.u32 %v814, 7
    %v816 = vsub.s32 %v813, %v815
    %v817 = vrot.slane %v810, %v816
    %v819 = vadd.f32 %v26, %v817
    %820 = vst [vmem:[%s2 + $0x8] sm:$0xf] %v819
    %s821 = scalar_lea.vmem [#allocation2], 768
    %v822 = vld [vmem:[%s821] sm:$0xff]
    %v823 = vld [vmem:[%s821 + $0x8] sm:$0xff]
    %v824 = vld [vmem:[%s821 + $0x10] sm:$0xff]
    %v825 = vld [vmem:[%s821 + $0x18] sm:$0xff]
    %v826 = vld [vmem:[%s821 + $0x20] sm:$0xff]
    %v827 = vld [vmem:[%s821 + $0x28] sm:$0xff]
    %v828 = vld [vmem:[%s821 + $0x30] sm:$0xff]
    %v829 = vld [vmem:[%s821 + $0x38] sm:$0xff]
    %v830 = vld [vmem:[%s821 + $0x40] sm:$0xff]
    %v831 = vld [vmem:[%s821 + $0x48] sm:$0xff]
    %v832 = vld [vmem:[%s821 + $0x50] sm:$0xff]
    %v833 = vld [vmem:[%s821 + $0x58] sm:$0xff]
    %v834 = vld [vmem:[%s821 + $0x60] sm:$0xff]
    %v835 = vld [vmem:[%s821 + $0x68] sm:$0xff]
    %v836 = vld [vmem:[%s821 + $0x70] sm:$0xff]
    %v837 = vld [vmem:[%s821 + $0x78] sm:$0xff]
    %v838 = vld [vmem:[%s821 + $0x80] sm:$0xff]
    %v839 = vld [vmem:[%s821 + $0x88] sm:$0xff]
    %v840 = vld [vmem:[%s821 + $0x90] sm:$0xff]
    %v841 = vld [vmem:[%s821 + $0x98] sm:$0xff]
    %v842 = vld [vmem:[%s821 + $0xa0] sm:$0xff]
    %v843 = vld [vmem:[%s821 + $0xa8] sm:$0xff]
    %v844 = vld [vmem:[%s821 + $0xb0] sm:$0xff]
    %v845 = vld [vmem:[%s821 + $0xb8] sm:$0xff]
    %v846 = vld [vmem:[%s821 + $0xc0] sm:$0xff]
    %v847 = vld [vmem:[%s821 + $0xc8] sm:$0xff]
    %v848 = vld [vmem:[%s821 + $0xd0] sm:$0xff]
    %v849 = vld [vmem:[%s821 + $0xd8] sm:$0xff]
    %v850 = vld [vmem:[%s821 + $0xe0] sm:$0xff]
    %v851 = vld [vmem:[%s821 + $0xe8] sm:$0xff]
    %v852 = vld [vmem:[%s821 + $0xf0] sm:$0xff]
    %v853 = vld [vmem:[%s821 + $0xf8] sm:$0xff]
    %v886 = vunpack.c.l.b16 %v822
    %v887 = vunpack.c.h.b16 %v822
    %v888 = vunpack.c.l.b16 %v823
    %v889 = vunpack.c.h.b16 %v823
    %v890 = vunpack.c.l.b16 %v824
    %v891 = vunpack.c.h.b16 %v824
    %v892 = vunpack.c.l.b16 %v825
    %v893 = vunpack.c.h.b16 %v825
    %v894 = vunpack.c.l.b16 %v826
    %v895 = vunpack.c.h.b16 %v826
    %v896 = vunpack.c.l.b16 %v827
    %v897 = vunpack.c.h.b16 %v827
    %v898 = vunpack.c.l.b16 %v828
    %v899 = vunpack.c.h.b16 %v828
    %v900 = vunpack.c.l.b16 %v829
    %v901 = vunpack.c.h.b16 %v829
    %v902 = vunpack.c.l.b16 %v830
    %v903 = vunpack.c.h.b16 %v830
    %v904 = vunpack.c.l.b16 %v831
    %v905 = vunpack.c.h.b16 %v831
    %v906 = vunpack.c.l.b16 %v832
    %v907 = vunpack.c.h.b16 %v832
    %v908 = vunpack.c.l.b16 %v833
    %v909 = vunpack.c.h.b16 %v833
    %v910 = vunpack.c.l.b16 %v834
    %v911 = vunpack.c.h.b16 %v834
    %v912 = vunpack.c.l.b16 %v835
    %v913 = vunpack.c.h.b16 %v835
    %v914 = vunpack.c.l.b16 %v836
    %v915 = vunpack.c.h.b16 %v836
    %v916 = vunpack.c.l.b16 %v837
    %v917 = vunpack.c.h.b16 %v837
    %v918 = vunpack.c.l.b16 %v838
    %v919 = vunpack.c.h.b16 %v838
    %v920 = vunpack.c.l.b16 %v839
    %v921 = vunpack.c.h.b16 %v839
    %v922 = vunpack.c.l.b16 %v840
    %v923 = vunpack.c.h.b16 %v840
    %v924 = vunpack.c.l.b16 %v841
    %v925 = vunpack.c.h.b16 %v841
    %v926 = vunpack.c.l.b16 %v842
    %v927 = vunpack.c.h.b16 %v842
    %v928 = vunpack.c.l.b16 %v843
    %v929 = vunpack.c.h.b16 %v843
    %v930 = vunpack.c.l.b16 %v844
    %v931 = vunpack.c.h.b16 %v844
    %v932 = vunpack.c.l.b16 %v845
    %v933 = vunpack.c.h.b16 %v845
    %v934 = vunpack.c.l.b16 %v846
    %v935 = vunpack.c.h.b16 %v846
    %v936 = vunpack.c.l.b16 %v847
    %v937 = vunpack.c.h.b16 %v847
    %v938 = vunpack.c.l.b16 %v848
    %v939 = vunpack.c.h.b16 %v848
    %v940 = vunpack.c.l.b16 %v849
    %v941 = vunpack.c.h.b16 %v849
    %v942 = vunpack.c.l.b16 %v850
    %v943 = vunpack.c.h.b16 %v850
    %v944 = vunpack.c.l.b16 %v851
    %v945 = vunpack.c.h.b16 %v851
    %v946 = vunpack.c.l.b16 %v852
    %v947 = vunpack.c.h.b16 %v852
    %v948 = vunpack.c.l.b16 %v853
    %v949 = vunpack.c.h.b16 %v853
    %v950 = vpack.c.b16 %v888, %v886
    %v951 = vpack.c.b16 %v889, %v887
    %v952 = vpack.c.b16 %v892, %v890
    %v953 = vpack.c.b16 %v893, %v891
    %v954 = vpack.c.b16 %v896, %v894
    %v955 = vpack.c.b16 %v897, %v895
    %v956 = vpack.c.b16 %v900, %v898
    %v957 = vpack.c.b16 %v901, %v899
    %v958 = vpack.c.b16 %v904, %v902
    %v959 = vpack.c.b16 %v905, %v903
    %v960 = vpack.c.b16 %v908, %v906
    %v961 = vpack.c.b16 %v909, %v907
    %v962 = vpack.c.b16 %v912, %v910
    %v963 = vpack.c.b16 %v913, %v911
    %v964 = vpack.c.b16 %v916, %v914
    %v965 = vpack.c.b16 %v917, %v915
    %v966 = vpack.c.b16 %v920, %v918
    %v967 = vpack.c.b16 %v921, %v919
    %v968 = vpack.c.b16 %v924, %v922
    %v969 = vpack.c.b16 %v925, %v923
    %v970 = vpack.c.b16 %v928, %v926
    %v971 = vpack.c.b16 %v929, %v927
    %v972 = vpack.c.b16 %v932, %v930
    %v973 = vpack.c.b16 %v933, %v931
    %v974 = vpack.c.b16 %v936, %v934
    %v975 = vpack.c.b16 %v937, %v935
    %v976 = vpack.c.b16 %v940, %v938
    %v977 = vpack.c.b16 %v941, %v939
    %v978 = vpack.c.b16 %v944, %v942
    %v979 = vpack.c.b16 %v945, %v943
    %v980 = vpack.c.b16 %v948, %v946
    %v981 = vpack.c.b16 %v949, %v947
    %1014 = vmatprep.subr.bf16.mxu0 %v951
    %1015 = vmatpush1.bf16.msra.mxu0 %v950
    %1016 = vmatprep.subr.bf16.mxu0 %v953
    %1017 = vmatpush1.bf16.msra.mxu0 %v952
    %1018 = vmatprep.subr.bf16.mxu0 %v955
    %1019 = vmatpush1.bf16.msra.mxu0 %v954
    %1020 = vmatprep.subr.bf16.mxu0 %v957
    %1021 = vmatpush1.bf16.msra.mxu0 %v956
    %1022 = vmatprep.subr.bf16.mxu0 %v959
    %1023 = vmatpush1.bf16.msra.mxu0 %v958
    %1024 = vmatprep.subr.bf16.mxu0 %v961
    %1025 = vmatpush1.bf16.msra.mxu0 %v960
    %1026 = vmatprep.subr.bf16.mxu0 %v963
    %1027 = vmatpush1.bf16.msra.mxu0 %v962
    %1028 = vmatprep.subr.bf16.mxu0 %v965
    %1029 = vmatpush1.bf16.msra.mxu0 %v964
    %1030 = vmatprep.subr.bf16.mxu0 %v967
    %1031 = vmatpush1.bf16.msra.mxu0 %v966
    %1032 = vmatprep.subr.bf16.mxu0 %v969
    %1033 = vmatpush1.bf16.msra.mxu0 %v968
    %1034 = vmatprep.subr.bf16.mxu0 %v971
    %1035 = vmatpush1.bf16.msra.mxu0 %v970
    %1036 = vmatprep.subr.bf16.mxu0 %v973
    %1037 = vmatpush1.bf16.msra.mxu0 %v972
    %1038 = vmatprep.subr.bf16.mxu0 %v975
    %1039 = vmatpush1.bf16.msra.mxu0 %v974
    %1040 = vmatprep.subr.bf16.mxu0 %v977
    %1041 = vmatpush1.bf16.msra.mxu0 %v976
    %1042 = vmatprep.subr.bf16.mxu0 %v979
    %1043 = vmatpush1.bf16.msra.mxu0 %v978
    %1044 = vmatprep.subr.bf16.mxu0 %v981
    %1045 = vmatpush1.bf16.msra.mxu0 %v980
    %1046 = vmatprep.mubr.bf16.mxu0 %v78
    %1047 = vmatmul.mubr.bf16.gmra.mrb[0].mxu0 %v77
    %v1048 = vpop.f32.mrb[0].mxu0
    %v1049 = vadd.f32 0.0, %v1048
    %v1050 = vpop.f32.mrb[0].mxu0
    %v1051 = vadd.f32 0.0, %v1050
    %v1052 = vpop.f32.mrb[0].mxu0
    %v1053 = vpop.f32.mrb[0].mxu0
    %1054 = vdwg.mxu0
    %v1055 = vrot.slane %v26, 4
    %v1059 = vcombine.low %v1049, %v1051
    %v1061 = vunpack.c.l.s4 1983009808
    %v1062 = vunpack.c.0.s8 %v1061
    %v1063 = vlaneseq
    %v1064 = vshrl.u32 %v1063, 7
    %v1065 = vsub.s32 %v1062, %v1064
    %v1066 = vrot.slane %v1059, %v1065
    %v1068 = vadd.f32 %v1055, %v1066
    %1069 = vst [vmem:[%s2 + $0xc] sm:$0xf] %v1068
    // Predicated region
    $region14: #{_fourier_filter.1} parent=1 // pred_check
      _
    $region15: #{_fourier_filter.1} parent=1 // pred_check_branch
      %1071 = sbr.rel (0) target = $region17
    $region16: #{_fourier_filter.1} parent=1 // pred_region
      _
    $region17: #{_fourier_filter.1} parent=1 // pred_fallthru
      _
    // Predicated region
    $region18: #{_fourier_filter.1} parent=1 // pred_check
      _
    $region19: #{_fourier_filter.1} parent=1 // pred_check_branch
      %1073 = sbr.rel (0) target = $region21
    $region20: #{_fourier_filter.1} parent=1 // pred_region
      _
    $region21: #{_fourier_filter.1} parent=1 // pred_fallthru
      _
    %1074 = vsyncpa [#allocation3], 1

</llo_original>
